<compile_context>
chip_gen: v6e
topology: v6e:2x2x1
jax: 0.10.0
libtpu: 0.0.40
codegen_flags: <defaults>
</compile_context>

<pallas_src>
import functools

import jax
import jax.numpy as jnp
from jax import lax
from jax.experimental import pallas as pl
from jax.experimental.pallas import tpu as pltpu

_GOLDEN = -1640531527        # int32 bit-pattern of 0x9E3779B9
_MIX1 = 0x21F0AAAD           # splitmix32 finalizer constants
_MIX2 = 0x735A2D97
_INV24 = 1.0 / 16777216.0    # 2**-24


def _neg_sampler_kernel(seed_ref, out_ref, *, n_loc: int, tile_b: int, k_pad: int):
    i = pl.program_id(0)

    # Global element index for this tile (int32; wraps harmlessly if huge).
    row = lax.broadcasted_iota(jnp.int32, (tile_b, k_pad), 0) + i * tile_b
    col = lax.broadcasted_iota(jnp.int32, (tile_b, k_pad), 1)
    idx = row * jnp.int32(k_pad) + col

    # Stateless splitmix32-style hash of (index, seed): pure VPU int32 ops.
    seed = seed_ref[0]
    z = idx + (seed + jnp.int32(1)) * jnp.int32(_GOLDEN)
    z = (z ^ lax.shift_right_logical(z, 16)) * jnp.int32(_MIX1)
    z = (z ^ lax.shift_right_logical(z, 15)) * jnp.int32(_MIX2)
    z = z ^ lax.shift_right_logical(z, 15)

    # Top 24 bits -> uniform in [0,1), multiply-map into [1, n_loc) (no modulo).
    hi = lax.shift_right_logical(z, 8)                # in [0, 2^24)
    scale = jnp.float32((n_loc - 1) * _INV24)
    val = (hi.astype(jnp.float32) * scale).astype(jnp.int32) + jnp.int32(1)
    out_ref[...] = jnp.minimum(val, jnp.int32(n_loc - 1))


def neg_sampler_forward(trg_seq, k: int, n_loc: int, seed: int = 0):
    """Pallas equivalent of test_(n_loc).forward(trg_seq, k).

    Returns:
      neg_samples: int32   [len(trg_seq), k], uniform in [1, n_loc)
      probs:       float32 [len(trg_seq), k], all ones
    """
    b = trg_seq.shape[0]

    # Lane-dense output width and sublane-aligned row padding.
    k_pad = ((k + 127) // 128) * 128
    b_pad = ((b + 7) // 8) * 8

    # Row tile: <= ~2 MiB per (double-buffered) block, multiple of 8, <= 1024.
    max_rows = max(8, (((2 * 1024 * 1024) // (k_pad * 4)) // 8) * 8)
    tile_b = min(b_pad, 1024, max_rows)
    num_tiles = -(-b_pad // tile_b)
    b_pad = num_tiles * tile_b

    seed_arr = jnp.asarray([seed], dtype=jnp.int32)
    kernel = functools.partial(
        _neg_sampler_kernel, n_loc=n_loc, tile_b=tile_b, k_pad=k_pad)

    out = pl.pallas_call(
        kernel,
        out_shape=jax.ShapeDtypeStruct((b_pad, k_pad), jnp.int32),
        grid=(num_tiles,),
        in_specs=[pl.BlockSpec(memory_space=pltpu.SMEM)],
        out_specs=pl.BlockSpec((tile_b, k_pad), lambda i: (i, 0)),
        compiler_params=pltpu.CompilerParams(
            dimension_semantics=("parallel",)),
    )(seed_arr)

    neg = out[:b, :k]
    # torch.ones(len(trg_seq), k, float32) — pure constant, made outside kernel.
    probs = jnp.ones((b, k), dtype=jnp.float32)
    return neg, probs


if __name__ == "__main__":
    key = jax.random.PRNGKey(0)

    # Small shapes consistent with the module's usage: only len(trg_seq) matters.
    B, SEQ = 8, 16
    K = 64
    N_LOC = 1000

    trg_seq = jax.random.randint(key, (B, SEQ), minval=1, maxval=N_LOC,
                                 dtype=jnp.int32)

    neg, probs = neg_sampler_forward(trg_seq, K, N_LOC, seed=0)
    jax.block_until_ready((neg, probs))

    # Sanity checks mirroring torch semantics.
    assert neg.shape == (B, K) and neg.dtype == jnp.int32
    assert probs.shape == (B, K) and probs.dtype == jnp.float32
    assert bool(jnp.all(neg >= 1)) and bool(jnp.all(neg < N_LOC))
    assert bool(jnp.all(probs == 1.0))
    # Samples should not be degenerate (hash produces varied values).
    assert int(jnp.unique(neg).shape[0]) > 1

    print("KERNEL_OK")
</pallas_src>

<mosaic_0001>
module attributes {stable_mosaic.version = 11 : i64} {
  func.func @_neg_sampler_kernel(%arg0: i32, %arg1: memref<1xi32, #tpu.memory_space<smem>>, %arg2: memref<8x128xi32, #tpu.memory_space<vmem>>) attributes {dimension_semantics = [#tpu.dimension_semantics<parallel>], iteration_bounds = array<i64: 1>, scalar_prefetch = 0 : i64, scratch_operands = 0 : i64, tpu.core_type = #tpu.core_type<tc>, window_params = [{transform_indices = @transform_0, window_bounds = array<i64: 1>}, {transform_indices = @transform_1, window_bounds = array<i64: 8, 128>}]} {
    %0 = tpu.iota {dimensions = array<i32: 0>} : vector<8x128xi32>
    %c8_i32 = arith.constant 8 : i32
    %1 = arith.muli %arg0, %c8_i32 : i32
    %2 = vector.broadcast %1 : i32 to vector<8x128xi32>
    %3 = arith.addi %0, %2 : vector<8x128xi32>
    %4 = tpu.iota {dimensions = array<i32: 1>} : vector<8x128xi32>
    %c128_i32 = arith.constant 128 : i32
    %5 = vector.broadcast %c128_i32 : i32 to vector<8x128xi32>
    %6 = arith.muli %3, %5 : vector<8x128xi32>
    %7 = arith.addi %6, %4 : vector<8x128xi32>
    %c0 = arith.constant 0 : index
    %8 = memref.load %arg1[%c0] : memref<1xi32, #tpu.memory_space<smem>>
    %c1_i32 = arith.constant 1 : i32
    %9 = arith.addi %8, %c1_i32 : i32
    %c-1640531527_i32 = arith.constant -1640531527 : i32
    %10 = arith.muli %9, %c-1640531527_i32 : i32
    %11 = vector.broadcast %10 : i32 to vector<8x128xi32>
    %12 = arith.addi %7, %11 : vector<8x128xi32>
    %c16_i32 = arith.constant 16 : i32
    %13 = vector.broadcast %c16_i32 : i32 to vector<8x128xi32>
    %14 = arith.shrui %12, %13 : vector<8x128xi32>
    %15 = arith.xori %12, %14 : vector<8x128xi32>
    %c569420461_i32 = arith.constant 569420461 : i32
    %16 = vector.broadcast %c569420461_i32 : i32 to vector<8x128xi32>
    %17 = arith.muli %15, %16 : vector<8x128xi32>
    %c15_i32 = arith.constant 15 : i32
    %18 = vector.broadcast %c15_i32 : i32 to vector<8x128xi32>
    %19 = arith.shrui %17, %18 : vector<8x128xi32>
    %20 = arith.xori %17, %19 : vector<8x128xi32>
    %c1935289751_i32 = arith.constant 1935289751 : i32
    %21 = vector.broadcast %c1935289751_i32 : i32 to vector<8x128xi32>
    %22 = arith.muli %20, %21 : vector<8x128xi32>
    %c15_i32_0 = arith.constant 15 : i32
    %23 = vector.broadcast %c15_i32_0 : i32 to vector<8x128xi32>
    %24 = arith.shrui %22, %23 : vector<8x128xi32>
    %25 = arith.xori %22, %24 : vector<8x128xi32>
    %c8_i32_1 = arith.constant 8 : i32
    %26 = vector.broadcast %c8_i32_1 : i32 to vector<8x128xi32>
    %27 = arith.shrui %25, %26 : vector<8x128xi32>
    %28 = arith.sitofp %27 : vector<8x128xi32> to vector<8x128xf32>
    %cst = arith.constant 5.95450401E-5 : f32
    %29 = vector.broadcast %cst : f32 to vector<8x128xf32>
    %30 = arith.mulf %28, %29 : vector<8x128xf32>
    %31 = arith.fptosi %30 : vector<8x128xf32> to vector<8x128xi32>
    %c1_i32_2 = arith.constant 1 : i32
    %32 = vector.broadcast %c1_i32_2 : i32 to vector<8x128xi32>
    %33 = arith.addi %31, %32 : vector<8x128xi32>
    %c999_i32 = arith.constant 999 : i32
    %34 = vector.broadcast %c999_i32 : i32 to vector<8x128xi32>
    %35 = arith.minsi %33, %34 : vector<8x128xi32>
    %c0_3 = arith.constant 0 : index
    %c0_4 = arith.constant 0 : index
    %36 = vector.load %arg2[%c0_3, %c0_4] : memref<8x128xi32, #tpu.memory_space<vmem>>, vector<8x128xi32>
    tpu.vector_store %arg2[%c0_3, %c0_4], %35 {strides = array<i32>} : memref<8x128xi32, #tpu.memory_space<vmem>>, vector<8x128xi32>,
    return
  }
  func.func @transform_0(%arg0: i32) -> i32 {
    %c0_i32 = arith.constant 0 : i32
    %c0_i32_0 = arith.constant 0 : i32
    return %c0_i32 : i32
  }
  func.func @transform_1(%arg0: i32) -> (i32, i32) {
    %c0_i32 = arith.constant 0 : i32
    %c0_i32_0 = arith.constant 0 : i32
    return %arg0, %c0_i32 : i32, i32
  }
}

</mosaic_0001>

<llo_original>
// kernel: tpu_custom_call.1
$region0: #{tpu_custom_call.1}
  #allocation0 [shape = 'u32[]', space=smem, size = 0x4, offset = 0x4, fixed_abs, tag = 'smem constant byte address 0x4 - core index']
  #allocation1 [shape = 'u32[144,128]{1,0:T(1,128)}', space=vmem, size = 0x12000, scoped, tag = 'internal scratch']
  #allocation2 [shape = 's32[1]{0:T(128)S(6)}', space=smem, size = 0x200, scoped, tag = 'scoped memory for tpu_custom_call.1']
  %s0 = inlined_call_operand.<no memory space> [shape: s32[1], index: 0, kind: input, shape index: {}]
  %s1 = inlined_call_operand.hbm [shape: s32[8,128], index: 1, kind: output, shape index: {}]
  %s2 = sld [smem:[#allocation0]]
  $region14: #{tpu_custom_call.1} parent=0
    _
  %s4 = ssub.s32 1, %s2
  %s5 = scalar_select 0, %s4, %s2
  %6 = sst [smem:[#allocation2]] %s0
  $region1: #{tpu_custom_call.1} parent=0
    #allocation3 [shape = 'u8[4096]{0}', space=vmem, size = 0x1000, scoped, tag = 'output window, operand 0, single buffered']
    #allocation4 [shape = 's32[1]{0}', space=sflag, size = 0x4, scoped, tag = 'scoped memory for tpu_custom_call.1']
    %7 = vsyncpa [#allocation4], 0
    // Predicated region
    $region2: #{tpu_custom_call.1} parent=1 // pred_check
      _
    $region3: #{tpu_custom_call.1} parent=1 // pred_check_branch
      %9 = sbr.rel (0) target = $region5
    $region4: #{tpu_custom_call.1} parent=1 // pred_region
      _
    $region5: #{tpu_custom_call.1} parent=1 // pred_fallthru
      _
    %v10 = vlaneseq
    %v11 = vshrl.u32 %v10, 7
    %s12 = smul.u32 0, 8
    %v13 = vstv %s12
    %v14 = vadd.s32 %v11, %v13
    %v15 = vlaneseq
    %v16 = vand.u32 %v15, 127
    %v17 = vmul.u32 %v14, 128
    %v18 = vadd.s32 %v17, %v16
    %s19 = sld [smem:[#allocation2]]
    %s20 = sadd.s32 %s19, 1
    %s21 = smul.u32 %s20, 2654435769
    %v22 = vstv %s21
    %v23 = vadd.s32 %v18, %v22
    %v24 = vshrl.u32 %v23, 16
    %v25 = vxor.u32 %v23, %v24
    %v26 = vmul.u32 %v25, 569420461
    %v27 = vshrl.u32 %v26, 15
    %v28 = vxor.u32 %v26, %v27
    %v29 = vmul.u32 %v28, 1935289751
    %v30 = vshrl.u32 %v29, 15
    %v31 = vxor.u32 %v29, %v30
    %v32 = vshrl.u32 %v31, 8
    %v33 = vcvt.s32.f32 %v32
    %v34 = vmul.f32 %v33, 5.954504e-05
    %v35 = vcvt.f32.s32.to.zero.pseudo %v34
    %v36 = vadd.s32 %v35, 1
    %vm37 = vcmp.lt.s32.totalorder %v36, 999
    %v38 = vsel %vm37, %v36, 999
    %39 = vst [vmem:[#allocation3] sm:$0xff] %v38
    // Predicated region
    $region6: #{tpu_custom_call.1} parent=1 // pred_check
      _
    $region7: #{tpu_custom_call.1} parent=1 // pred_check_branch
      %41 = sbr.rel (0) target = $region9
    $region8: #{tpu_custom_call.1} parent=1 // pred_region
      %s43 = ssub.s32 128, 128
      %44 = vsyncadd [#allocation4], %s43
      %s46 = sshll.u32 [#allocation3], 4
      %s47 = int_to_ptr.vmem [resolvable:$true] %s46
      %49 = dma.vmem_to_hbm [thread:$0]  %s47, 128, %s1, [#allocation4]
    $region9: #{tpu_custom_call.1} parent=1 // pred_fallthru
      _
    // Predicated region
    $region10: #{tpu_custom_call.1} parent=1 // pred_check
      _
    $region11: #{tpu_custom_call.1} parent=1 // pred_check_branch
      %51 = sbr.rel (0) target = $region13
    $region12: #{tpu_custom_call.1} parent=1 // pred_region
      %52 = dma.done [#allocation4], 128
    $region13: #{tpu_custom_call.1} parent=1 // pred_fallthru
      _
    %53 = vsyncpa [#allocation4], 1

</llo_original>
